<compile_context>
chip_gen: v7x
topology: tpu7x:2x2x1
jax: 0.10.0
libtpu: 0.0.40
codegen_flags: <defaults>
</compile_context>

<pallas_src>
import jax
import jax.numpy as jnp
from jax.experimental import pallas as pl
from jax.experimental.pallas import tpu as pltpu


def _block_kernel(xt_ref, w1_ref, b1_ref, w2_ref, b2_ref, o_ref):
    """One batch tile of: out = tanh(W2 @ tanh(W1 @ x^T + b1) + b2) + x^T.

    Shapes (feature-major, batch along lanes):
      xt_ref : (D, TN)  bf16   activation tile (streamed over the grid)
      w1_ref : (W, D)   bf16   VMEM-resident
      b1_ref : (W, 1)   f32    VMEM-resident
      w2_ref : (D, W)   bf16   VMEM-resident
      b2_ref : (D, 1)   f32    VMEM-resident
      o_ref  : (D, TN)  bf16
    """
    xt = xt_ref[...]                                             # (D, TN)

    # L1 + tanh: (W, D) @ (D, TN) -> (W, TN); f32 accumulation, f32 tanh.
    h = jnp.tanh(
        jnp.dot(w1_ref[...], xt, preferred_element_type=jnp.float32)
        + b1_ref[...]
    )

    # L2 + tanh: back to bf16 for the MXU, accumulate in f32.
    y = jnp.tanh(
        jnp.dot(w2_ref[...], h.astype(w2_ref.dtype),
                preferred_element_type=jnp.float32)
        + b2_ref[...]
    )

    # Residual: reuse the xt vregs loaded above (no second read of x).
    o_ref[...] = (y + xt.astype(jnp.float32)).astype(o_ref.dtype)


def block_forward(x, w1, b1, w2, b2, *, block_rows=8192,
                  storage_dtype=jnp.bfloat16):
    """Forward of the Deep-Ritz Block: tanh(L2(tanh(L1(x)))) + x.

    x  : (N, D) float32 (PyTorch layout)
    w1 : (W, D), b1 : (W,)   -- nn.Linear(in_N=D, width=W)
    w2 : (D, W), b2 : (D,)   -- nn.Linear(width=W, out_N=D)
    Returns (N, D) in `storage_dtype`.

    Note: when chaining many Blocks, the next lever is fusing them in one
    pallas_call and keeping activations in the (D, N) layout between layers;
    here we implement the single Block the module defines.
    """
    N, D = x.shape
    W = w1.shape[0]
    assert w1.shape == (W, D) and w2.shape == (D, W)
    assert b1.shape == (W,) and b2.shape == (D,)

    # Lane (last) dim of the tile must be a multiple of 128; make it as large
    # as reasonable so per-grid-step overhead / short DMAs don't dominate.
    tn = max(128, ((min(block_rows, N) + 127) // 128) * 128)
    n_pad = pl.cdiv(N, tn) * tn
    grid = (n_pad // tn,)

    # Feature-major ("batch on lanes") layout: x^T is (D, N), zero-padded in N.
    xt = jnp.transpose(x).astype(storage_dtype)
    if n_pad != N:
        xt = jnp.pad(xt, ((0, 0), (0, n_pad - N)))

    w1s = w1.astype(storage_dtype)
    w2s = w2.astype(storage_dtype)
    b1c = b1.reshape(W, 1).astype(jnp.float32)
    b2c = b2.reshape(D, 1).astype(jnp.float32)

    out_t = pl.pallas_call(
        _block_kernel,
        out_shape=jax.ShapeDtypeStruct((D, n_pad), storage_dtype),
        grid_spec=pltpu.PrefetchScalarGridSpec(
            num_scalar_prefetch=0,
            grid=grid,
            in_specs=[
                pl.BlockSpec((D, tn), lambda i: (0, i)),   # x^T tile (streamed)
                pl.BlockSpec((W, D), lambda i: (0, 0)),    # W1 (resident)
                pl.BlockSpec((W, 1), lambda i: (0, 0)),    # b1 (resident)
                pl.BlockSpec((D, W), lambda i: (0, 0)),    # W2 (resident)
                pl.BlockSpec((D, 1), lambda i: (0, 0)),    # b2 (resident)
            ],
            out_specs=pl.BlockSpec((D, tn), lambda i: (0, i)),
        ),
        compiler_params=pltpu.CompilerParams(
            # Batch tiles are independent -> shard across both TCs on v7x.
            dimension_semantics=("parallel",),
        ),
    )(xt, w1s, b1c, w2s, b2c)

    # Strip batch padding and return in the original (N, D) layout.
    return jnp.transpose(out_t[:, :N])


if __name__ == "__main__":
    # Block(in_N=D, width=W, out_N=D); the residual requires in_N == out_N.
    N, D, W = 300, 16, 32

    key = jax.random.PRNGKey(0)
    kx, k1w, k1b, k2w, k2b = jax.random.split(key, 5)

    x = jax.random.normal(kx, (N, D), dtype=jnp.float32)

    # PyTorch nn.Linear-style uniform init (deterministic).
    bound1 = 1.0 / jnp.sqrt(D)
    w1 = jax.random.uniform(k1w, (W, D), minval=-bound1, maxval=bound1,
                            dtype=jnp.float32)
    b1 = jax.random.uniform(k1b, (W,), minval=-bound1, maxval=bound1,
                            dtype=jnp.float32)
    bound2 = 1.0 / jnp.sqrt(W)
    w2 = jax.random.uniform(k2w, (D, W), minval=-bound2, maxval=bound2,
                            dtype=jnp.float32)
    b2 = jax.random.uniform(k2b, (D,), minval=-bound2, maxval=bound2,
                            dtype=jnp.float32)

    # Small block_rows so the test exercises a multi-step pipelined grid plus
    # the batch-padding path; production default is 8192 rows per tile.
    out = block_forward(x, w1, b1, w2, b2, block_rows=128)
    out = jax.block_until_ready(out)

    # Pure-JAX reference with matching bf16 storage casts (f32 accumulation).
    f32 = jnp.float32
    xb = x.astype(jnp.bfloat16).astype(f32)
    w1b = w1.astype(jnp.bfloat16).astype(f32)
    w2b = w2.astype(jnp.bfloat16).astype(f32)
    h = jnp.tanh(xb @ w1b.T + b1)
    hb = h.astype(jnp.bfloat16).astype(f32)
    ref = jnp.tanh(hb @ w2b.T + b2) + xb

    assert out.shape == (N, D) and out.dtype == jnp.bfloat16
    err = float(jnp.max(jnp.abs(out.astype(f32) - ref)))
    assert jnp.allclose(out.astype(f32), ref, atol=3e-2, rtol=3e-2), err

    print("KERNEL_OK")
</pallas_src>

<mosaic_0001>
module attributes {stable_mosaic.version = 11 : i64} {
  func.func @_block_kernel(%arg0: i32, %arg1: memref<16x128xbf16, #tpu.memory_space<vmem>>, %arg2: memref<32x16xbf16, #tpu.memory_space<vmem>>, %arg3: memref<32x1xf32, #tpu.memory_space<vmem>>, %arg4: memref<16x32xbf16, #tpu.memory_space<vmem>>, %arg5: memref<16x1xf32, #tpu.memory_space<vmem>>, %arg6: memref<16x128xbf16, #tpu.memory_space<vmem>>) attributes {dimension_semantics = [#tpu.dimension_semantics<parallel>], iteration_bounds = array<i64: 3>, scalar_prefetch = 0 : i64, scratch_operands = 0 : i64, tpu.core_type = #tpu.core_type<tc>, window_params = [{transform_indices = @transform_0, window_bounds = array<i64: 16, 128>}, {pipeline_mode = #tpu.pipeline_mode<synchronous>, transform_indices = @transform_1, window_bounds = array<i64: 32, 16>}, {pipeline_mode = #tpu.pipeline_mode<synchronous>, transform_indices = @transform_2, window_bounds = array<i64: 32, 1>}, {pipeline_mode = #tpu.pipeline_mode<synchronous>, transform_indices = @transform_3, window_bounds = array<i64: 16, 32>}, {pipeline_mode = #tpu.pipeline_mode<synchronous>, transform_indices = @transform_4, window_bounds = array<i64: 16, 1>}, {transform_indices = @transform_5, window_bounds = array<i64: 16, 128>}]} {
    %c0 = arith.constant 0 : index
    %c0_0 = arith.constant 0 : index
    %0 = vector.load %arg1[%c0, %c0_0] : memref<16x128xbf16, #tpu.memory_space<vmem>>, vector<16x128xbf16>
    %c0_1 = arith.constant 0 : index
    %c0_2 = arith.constant 0 : index
    %1 = vector.load %arg2[%c0_1, %c0_2] : memref<32x16xbf16, #tpu.memory_space<vmem>>, vector<32x16xbf16>
    %cst = arith.constant dense<0.000000e+00> : vector<32x128xf32>
    %2 = tpu.matmul %1, %0, %cst {dimension_numbers = #tpu.dot_dimension_numbers<[1], [0], [0], [1], [0, 0, 1, 1], [], []>} : vector<32x16xbf16>, vector<16x128xbf16>, vector<32x128xf32> -> vector<32x128xf32>
    %c0_3 = arith.constant 0 : index
    %c0_4 = arith.constant 0 : index
    %3 = vector.load %arg3[%c0_3, %c0_4] : memref<32x1xf32, #tpu.memory_space<vmem>>, vector<32x1xf32>
    %4 = vector.broadcast %3 : vector<32x1xf32> to vector<32x128xf32>
    %5 = arith.addf %2, %4 : vector<32x128xf32>
    %6 = math.tanh %5 : vector<32x128xf32>
    %c0_5 = arith.constant 0 : index
    %c0_6 = arith.constant 0 : index
    %7 = vector.load %arg4[%c0_5, %c0_6] : memref<16x32xbf16, #tpu.memory_space<vmem>>, vector<16x32xbf16>
    %8 = arith.truncf %6 : vector<32x128xf32> to vector<32x128xbf16>
    %cst_7 = arith.constant dense<0.000000e+00> : vector<16x128xf32>
    %9 = tpu.matmul %7, %8, %cst_7 {dimension_numbers = #tpu.dot_dimension_numbers<[1], [0], [0], [1], [0, 0, 1, 1], [], []>} : vector<16x32xbf16>, vector<32x128xbf16>, vector<16x128xf32> -> vector<16x128xf32>
    %c0_8 = arith.constant 0 : index
    %c0_9 = arith.constant 0 : index
    %10 = vector.load %arg5[%c0_8, %c0_9] : memref<16x1xf32, #tpu.memory_space<vmem>>, vector<16x1xf32>
    %11 = vector.broadcast %10 : vector<16x1xf32> to vector<16x128xf32>
    %12 = arith.addf %9, %11 : vector<16x128xf32>
    %13 = math.tanh %12 : vector<16x128xf32>
    %14 = arith.extf %0 : vector<16x128xbf16> to vector<16x128xf32>
    %15 = arith.addf %13, %14 : vector<16x128xf32>
    %16 = arith.truncf %15 : vector<16x128xf32> to vector<16x128xbf16>
    %c0_10 = arith.constant 0 : index
    %c0_11 = arith.constant 0 : index
    %17 = vector.load %arg6[%c0_10, %c0_11] : memref<16x128xbf16, #tpu.memory_space<vmem>>, vector<16x128xbf16>
    tpu.vector_store %arg6[%c0_10, %c0_11], %16 {strides = array<i32>} : memref<16x128xbf16, #tpu.memory_space<vmem>>, vector<16x128xbf16>,
    return
  }
  func.func @transform_0(%arg0: i32) -> (i32, i32) {
    %c0_i32 = arith.constant 0 : i32
    %c0_i32_0 = arith.constant 0 : i32
    return %c0_i32, %arg0 : i32, i32
  }
  func.func @transform_1(%arg0: i32) -> (i32, i32) {
    %c0_i32 = arith.constant 0 : i32
    %c0_i32_0 = arith.constant 0 : i32
    %c0_i32_1 = arith.constant 0 : i32
    return %c0_i32, %c0_i32_0 : i32, i32
  }
  func.func @transform_2(%arg0: i32) -> (i32, i32) {
    %c0_i32 = arith.constant 0 : i32
    %c0_i32_0 = arith.constant 0 : i32
    %c0_i32_1 = arith.constant 0 : i32
    return %c0_i32, %c0_i32_0 : i32, i32
  }
  func.func @transform_3(%arg0: i32) -> (i32, i32) {
    %c0_i32 = arith.constant 0 : i32
    %c0_i32_0 = arith.constant 0 : i32
    %c0_i32_1 = arith.constant 0 : i32
    return %c0_i32, %c0_i32_0 : i32, i32
  }
  func.func @transform_4(%arg0: i32) -> (i32, i32) {
    %c0_i32 = arith.constant 0 : i32
    %c0_i32_0 = arith.constant 0 : i32
    %c0_i32_1 = arith.constant 0 : i32
    return %c0_i32, %c0_i32_0 : i32, i32
  }
  func.func @transform_5(%arg0: i32) -> (i32, i32) {
    %c0_i32 = arith.constant 0 : i32
    %c0_i32_0 = arith.constant 0 : i32
    return %c0_i32, %arg0 : i32, i32
  }
}

</mosaic_0001>

<llo_original>
// kernel: tpu_custom_call.1
$region0: #{tpu_custom_call.1}
  #allocation0 [shape = 'u32[]', space=smem, size = 0x4, offset = 0x4, fixed_abs, tag = 'smem constant byte address 0x4 - core index']
  #allocation1 [shape = 'u32[144,128]{1,0:T(1,128)}', space=vmem, size = 0x12000, scoped, tag = 'internal scratch']
  %s0 = inlined_call_operand.vmem [shape: bf16[16,384], index: 0, kind: input, shape index: {}]
  %s1 = inlined_call_operand.vmem [shape: bf16[32,16], index: 1, kind: input, shape index: {}]
  %s2 = inlined_call_operand.vmem [shape: f32[32,1], index: 2, kind: input, shape index: {}]
  %s3 = inlined_call_operand.vmem [shape: bf16[16,32], index: 3, kind: input, shape index: {}]
  %s4 = inlined_call_operand.vmem [shape: f32[16,1], index: 4, kind: input, shape index: {}]
  %s5 = inlined_call_operand.hbm [shape: bf16[16,384], index: 5, kind: output, shape index: {}]
  %s6 = sld [smem:[#allocation0]]
  $region94: #{tpu_custom_call.1} parent=0
    _
  %s8 = ssub.s32 1, %s6
  %s9 = scalar_select 0, %s8, %s6
  $region1: #{tpu_custom_call.1} parent=0
    #allocation2 [shape = 'u8[8192]{0}', space=vmem, size = 0x2000, scoped, tag = 'input window, operand 0']
    #allocation3 [shape = 'u8[8192]{0}', space=vmem, size = 0x2000, scoped, tag = 'output window, operand 0']
    #allocation4 [shape = 's32[2]{0}', space=sflag, size = 0x8, scoped, tag = 'scoped memory for tpu_custom_call.1']
    %10 = vsyncpa [#allocation4], 0
    %s11 = scalar_lea.sflag [#allocation4], 1
    %12 = vsyncpa %s11, 0
    loop: start=0, step=1, limit=5
    $region2: #{tpu_custom_call.1} parent=1 // loop_pre_header
      _
    $region3: #{tpu_custom_call.1} parent=1 // loop_header
      %s14 = sphi 0, %s18
      %p15 = scmp.ge.s32.totalorder %s14, 5
      %s24 = sphi 0, %s26
      %s27 = sphi 0, %s24
      %s28 = sphi 0, %s27
      %s44 = sphi 0, %s28
      %s48 = sphi 0, %s48
      %s50 = sphi 0, %s48
      %s51 = sphi 0, %s50
      %s65 = sphi 0, %s51
      %s69 = sphi 0, %s69
      %s71 = sphi 0, %s69
      %s72 = sphi 0, %s71
      %s86 = sphi 0, %s72
      %s90 = sphi 0, %s90
      %s92 = sphi 0, %s90
      %s93 = sphi 0, %s92
      %s107 = sphi 0, %s93
      %s111 = sphi 0, %s111
      %s113 = sphi 0, %s111
      %s114 = sphi 0, %s113
      %s128 = sphi 0, %s114
      %s134 = sphi 0, %s136
      %s137 = sphi 0, %s134
      %s138 = sphi 0, %s137
      %s154 = sphi 0, %s138
    $region4: #{tpu_custom_call.1} parent=1 // loop_header_branch
      %17 = sbr.rel (%p15) target = $region8
    $region5: #{tpu_custom_call.1} parent=1 // loop_body
      %s19 = ssub.s32 %s14, 1
      %s20 = ssub.s32 %s14, 2
      %s21 = sadd.s32 %s14, 1
      %s22 = ssub.s32 %s14, %s21
      %p23 = scmp.eq.s32.totalorder %s22, 0
      %s25 = sadd.s32 %s24, 1
      %s26 = scalar_select %p23, %s24, %s25
      %p29 = pneg %p23
      %p30 = scmp.eq.s32.totalorder %s14, 2
      %p31 = por %p29, %p30
      %p32 = scmp.ne.s32.totalorder %s24, %s27
      %p33 = scmp.eq.s32.totalorder %s14, 0
      %p34 = por %p32, %p33
      %p35 = scmp.ne.s32.totalorder %s24, %s27
      %p36 = scmp.eq.s32.totalorder %s19, 2
      %p37 = por %p35, %p36
      %p38 = scmp.ne.s32.totalorder %s27, %s28
      %p39 = scmp.eq.s32.totalorder %s19, 0
      %p40 = por %p38, %p39
      %p41 = scmp.ne.s32.totalorder %s27, %s28
      %p42 = scmp.eq.s32.totalorder %s20, 2
      %p43 = por %p41, %p42
      %p45 = scmp.ne.s32.totalorder %s28, %s44
      %p46 = scmp.eq.s32.totalorder %s20, 0
      %p47 = por %p45, %p46
      %s49 = sadd.s32 %s48, 1
      %p52 = scmp.eq.s32.totalorder %s14, 2
      %p53 = scmp.ne.s32.totalorder %s48, %s50
      %p54 = scmp.eq.s32.totalorder %s14, 0
      %p55 = por %p53, %p54
      %p56 = scmp.ne.s32.totalorder %s48, %s50
      %p57 = scmp.eq.s32.totalorder %s19, 2
      %p58 = por %p56, %p57
      %p59 = scmp.ne.s32.totalorder %s50, %s51
      %p60 = scmp.eq.s32.totalorder %s19, 0
      %p61 = por %p59, %p60
      %p62 = scmp.ne.s32.totalorder %s50, %s51
      %p63 = scmp.eq.s32.totalorder %s20, 2
      %p64 = por %p62, %p63
      %p66 = scmp.ne.s32.totalorder %s51, %s65
      %p67 = scmp.eq.s32.totalorder %s20, 0
      %p68 = por %p66, %p67
      %s70 = sadd.s32 %s69, 1
      %p73 = scmp.eq.s32.totalorder %s14, 2
      %p74 = scmp.ne.s32.totalorder %s69, %s71
      %p75 = scmp.eq.s32.totalorder %s14, 0
      %p76 = por %p74, %p75
      %p77 = scmp.ne.s32.totalorder %s69, %s71
      %p78 = scmp.eq.s32.totalorder %s19, 2
      %p79 = por %p77, %p78
      %p80 = scmp.ne.s32.totalorder %s71, %s72
      %p81 = scmp.eq.s32.totalorder %s19, 0
      %p82 = por %p80, %p81
      %p83 = scmp.ne.s32.totalorder %s71, %s72
      %p84 = scmp.eq.s32.totalorder %s20, 2
      %p85 = por %p83, %p84
      %p87 = scmp.ne.s32.totalorder %s72, %s86
      %p88 = scmp.eq.s32.totalorder %s20, 0
      %p89 = por %p87, %p88
      %s91 = sadd.s32 %s90, 1
      %p94 = scmp.eq.s32.totalorder %s14, 2
      %p95 = scmp.ne.s32.totalorder %s90, %s92
      %p96 = scmp.eq.s32.totalorder %s14, 0
      %p97 = por %p95, %p96
      %p98 = scmp.ne.s32.totalorder %s90, %s92
      %p99 = scmp.eq.s32.totalorder %s19, 2
      %p100 = por %p98, %p99
      %p101 = scmp.ne.s32.totalorder %s92, %s93
      %p102 = scmp.eq.s32.totalorder %s19, 0
      %p103 = por %p101, %p102
      %p104 = scmp.ne.s32.totalorder %s92, %s93
      %p105 = scmp.eq.s32.totalorder %s20, 2
      %p106 = por %p104, %p105
      %p108 = scmp.ne.s32.totalorder %s93, %s107
      %p109 = scmp.eq.s32.totalorder %s20, 0
      %p110 = por %p108, %p109
      %s112 = sadd.s32 %s111, 1
      %p115 = scmp.eq.s32.totalorder %s14, 2
      %p116 = scmp.ne.s32.totalorder %s111, %s113
      %p117 = scmp.eq.s32.totalorder %s14, 0
      %p118 = por %p116, %p117
      %p119 = scmp.ne.s32.totalorder %s111, %s113
      %p120 = scmp.eq.s32.totalorder %s19, 2
      %p121 = por %p119, %p120
      %p122 = scmp.ne.s32.totalorder %s113, %s114
      %p123 = scmp.eq.s32.totalorder %s19, 0
      %p124 = por %p122, %p123
      %p125 = scmp.ne.s32.totalorder %s113, %s114
      %p126 = scmp.eq.s32.totalorder %s20, 2
      %p127 = por %p125, %p126
      %p129 = scmp.ne.s32.totalorder %s114, %s128
      %p130 = scmp.eq.s32.totalorder %s20, 0
      %p131 = por %p129, %p130
      %s132 = ssub.s32 %s14, %s21
      %p133 = scmp.eq.s32.totalorder %s132, 0
      %s135 = sadd.s32 %s134, 1
      %s136 = scalar_select %p133, %s134, %s135
      %p139 = pneg %p133
      %p140 = scmp.eq.s32.totalorder %s14, 2
      %p141 = por %p139, %p140
      %p142 = scmp.ne.s32.totalorder %s134, %s137
      %p143 = scmp.eq.s32.totalorder %s14, 0
      %p144 = por %p142, %p143
      %p145 = scmp.ne.s32.totalorder %s134, %s137
      %p146 = scmp.eq.s32.totalorder %s19, 2
      %p147 = por %p145, %p146
      %p148 = scmp.ne.s32.totalorder %s137, %s138
      %p149 = scmp.eq.s32.totalorder %s19, 0
      %p150 = por %p148, %p149
      %p151 = scmp.ne.s32.totalorder %s137, %s138
      %p152 = scmp.eq.s32.totalorder %s20, 2
      %p153 = por %p151, %p152
      %p155 = scmp.ne.s32.totalorder %s138, %s154
      %p156 = scmp.eq.s32.totalorder %s20, 0
      %p157 = por %p155, %p156
      %p158 = scmp.le.s32.totalorder 1, %s14
      %p159 = scmp.lt.s32.totalorder %s14, 4
      %p160 = pnand %p158, %p159
      %p161 = pneg %p160
      // Predicated region
      $region9: #{tpu_custom_call.1} parent=5 // pred_check
        _
      $region10: #{tpu_custom_call.1} parent=5 // pred_check_branch
        %163 = sbr.rel (%p160) target = $region12
      $region11: #{tpu_custom_call.1} parent=5 // pred_region
        %s164 = ssub.s32 %s14, 1
        // Predicated region
        $region13: #{tpu_custom_call.1} parent=11 // pred_check
          %p165 = pneg %p61
        $region14: #{tpu_custom_call.1} parent=11 // pred_check_branch
          %167 = sbr.rel (%p165) target = $region16
        $region15: #{tpu_custom_call.1} parent=11 // pred_region
          _
        $region16: #{tpu_custom_call.1} parent=11 // pred_fallthru
          _
        // Predicated region
        $region17: #{tpu_custom_call.1} parent=11 // pred_check
          %p168 = pneg %p82
        $region18: #{tpu_custom_call.1} parent=11 // pred_check_branch
          %170 = sbr.rel (%p168) target = $region20
        $region19: #{tpu_custom_call.1} parent=11 // pred_region
          _
        $region20: #{tpu_custom_call.1} parent=11 // pred_fallthru
          _
        // Predicated region
        $region21: #{tpu_custom_call.1} parent=11 // pred_check
          %p171 = pneg %p103
        $region22: #{tpu_custom_call.1} parent=11 // pred_check_branch
          %173 = sbr.rel (%p171) target = $region24
        $region23: #{tpu_custom_call.1} parent=11 // pred_region
          _
        $region24: #{tpu_custom_call.1} parent=11 // pred_fallthru
          _
        // Predicated region
        $region25: #{tpu_custom_call.1} parent=11 // pred_check
          %p174 = pneg %p124
        $region26: #{tpu_custom_call.1} parent=11 // pred_check_branch
          %176 = sbr.rel (%p174) target = $region28
        $region27: #{tpu_custom_call.1} parent=11 // pred_region
          _
        $region28: #{tpu_custom_call.1} parent=11 // pred_fallthru
          _
      $region12: #{tpu_custom_call.1} parent=5 // pred_fallthru
        _
      %p177 = scmp.lt.s32.totalorder %s14, 3
      // Predicated region
      $region29: #{tpu_custom_call.1} parent=5 // pred_check
        %p178 = pneg %p177
      $region30: #{tpu_custom_call.1} parent=5 // pred_check_branch
        %180 = sbr.rel (%p178) target = $region32
      $region31: #{tpu_custom_call.1} parent=5 // pred_region
        // Predicated region
        $region33: #{tpu_custom_call.1} parent=31 // pred_check
          %p181 = pneg %p34
        $region34: #{tpu_custom_call.1} parent=31 // pred_check_branch
          %183 = sbr.rel (%p181) target = $region36
        $region35: #{tpu_custom_call.1} parent=31 // pred_region
          %s184 = sand.u32 %s24, 1
          %s185 = sand.u32 %s24, 1
          %s186 = smul.addr %s185, 8
          %s187 = scalar_lea.vmem [#allocation2], %s186
          %s188 = smul.addr %s14, 4
          %s189 = scalar_lea.vmem %s0, %s188
          // Predicated region
          $region37: #{tpu_custom_call.1} parent=35 // pred_check
            _
          $region38: #{tpu_custom_call.1} parent=35 // pred_check_branch
            %191 = sbr.rel (0) target = $region40
          $region39: #{tpu_custom_call.1} parent=35 // pred_region
            // Predicated region
            $region41: #{tpu_custom_call.1} parent=39 // pred_check
              _
            $region42: #{tpu_custom_call.1} parent=39 // pred_check_branch
              %193 = sbr.rel target = $region44
            $region43: #{tpu_custom_call.1} parent=39 // pred_region
              // Predicated region
              $region56: #{tpu_custom_call.1} parent=43 // pred_check
                _
              $region57: #{tpu_custom_call.1} parent=43 // pred_check_branch
                %210 = sbr.rel (0) target = $region59
              $region58: #{tpu_custom_call.1} parent=43 // pred_region
                loop: start=0, step=1, limit=1
                $region60: #{tpu_custom_call.1} parent=58 // loop_pre_header
                  _
                $region61: #{tpu_custom_call.1} parent=58 // loop_header
                  %s212 = sphi 0, %s216
                  %p213 = scmp.ge.s32.totalorder %s212, 1
                  %s217 = sphi %s189, %s189
                  %s218 = sphi %s187, %s187
                $region62: #{tpu_custom_call.1} parent=58 // loop_header_branch
                  %215 = sbr.rel (%p213) target = $region66
                $region63: #{tpu_custom_call.1} parent=58 // loop_body
                  _
                $region64: #{tpu_custom_call.1} parent=58 // loop_footer
                  %s216 = sadd.s32 1, %s212
                $region65: #{tpu_custom_call.1} parent=58 // loop_footer_branch
                  %211 = sbr.rel target = $region61
                $region66: #{tpu_custom_call.1} parent=58 // loop_exit
                  _
                loop: start=0, step=1, limit=1
                $region67: #{tpu_custom_call.1} parent=58 // loop_pre_header
                  _
                $region68: #{tpu_custom_call.1} parent=58 // loop_header
                  %s221 = sphi 0, %s225
                  %p222 = scmp.ge.s32.totalorder %s221, 1
                  %s226 = sphi %s189, %s189
                  %s227 = sphi %s187, %s187
                $region69: #{tpu_custom_call.1} parent=58 // loop_header_branch
                  %224 = sbr.rel (%p222) target = $region73
                $region70: #{tpu_custom_call.1} parent=58 // loop_body
                  %v228 = vld [vmem:[%s226] sm:$0xf]
                  %229 = vst [vmem:[%s227] sm:$0xf] %v228
                  %v230 = vld [vmem:[%s226 + $0xc] sm:$0xf]
                  %231 = vst [vmem:[%s227 + $0x4] sm:$0xf] %v230
                $region71: #{tpu_custom_call.1} parent=58 // loop_footer
                  %s225 = sadd.s32 1, %s221
                $region72: #{tpu_custom_call.1} parent=58 // loop_footer_branch
                  %220 = sbr.rel target = $region68
                $region73: #{tpu_custom_call.1} parent=58 // loop_exit
                  _
              $region59: #{tpu_custom_call.1} parent=43 // pred_fallthru
                _
            $region44: #{tpu_custom_call.1} parent=39 // pred_fallthru
              _
            // Predicated region
            $region45: #{tpu_custom_call.1} parent=39 // pred_check
              _
            $region46: #{tpu_custom_call.1} parent=39 // pred_check_branch
              %195 = sbr.rel (0) target = $region48
            $region47: #{tpu_custom_call.1} parent=39 // pred_region
              loop: start=0, step=1, limit=1
              $region49: #{tpu_custom_call.1} parent=47 // loop_pre_header
                _
              $region50: #{tpu_custom_call.1} parent=47 // loop_header
                %s198 = sphi 0, %s202
                %p199 = scmp.ge.s32.totalorder %s198, 1
                %s203 = sphi %s189, %s189
                %s204 = sphi %s187, %s187
              $region51: #{tpu_custom_call.1} parent=47 // loop_header_branch
                %201 = sbr.rel (%p199) target = $region55
              $region52: #{tpu_custom_call.1} parent=47 // loop_body
                %v205 = vld [vmem:[%s203] sm:$0xf]
                %206 = vst [vmem:[%s204] sm:$0xf] %v205
                %v207 = vld [vmem:[%s203 + $0xc] sm:$0xf]
                %208 = vst [vmem:[%s204 + $0x4] sm:$0xf] %v207
              $region53: #{tpu_custom_call.1} parent=47 // loop_footer
                %s202 = sadd.s32 1, %s198
              $region54: #{tpu_custom_call.1} parent=47 // loop_footer_branch
                %197 = sbr.rel target = $region50
              $region55: #{tpu_custom_call.1} parent=47 // loop_exit
                _
            $region48: #{tpu_custom_call.1} parent=39 // pred_fallthru
              _
          $region40: #{tpu_custom_call.1} parent=35 // pred_fallthru
            _
          %232 = vnop
        $region36: #{tpu_custom_call.1} parent=31 // pred_fallthru
          _
      $region32: #{tpu_custom_call.1} parent=5 // pred_fallthru
        _
      %p233 = scmp.le.s32.totalorder 1, %s14
      %p234 = scmp.lt.s32.totalorder %s14, 4
      %p235 = pnand %p233, %p234
      %p236 = pneg %p235
      // Predicated region
      $region74: #{tpu_custom_call.1} parent=5 // pred_check
        _
      $region75: #{tpu_custom_call.1} parent=5 // pred_check_branch
        %238 = sbr.rel (%p235) target = $region77
      $region76: #{tpu_custom_call.1} parent=5 // pred_region
        %s239 = ssub.s32 %s14, 1
        %s240 = sand.u32 %s27, 1
        %s241 = sand.u32 %s27, 1
        %s242 = smul.addr %s241, 8
        %s243 = scalar_lea.vmem [#allocation2], %s242
        // Predicated region
        $region78: #{tpu_custom_call.1} parent=76 // pred_check
          %p244 = pneg %p40
        $region79: #{tpu_custom_call.1} parent=76 // pred_check_branch
          %246 = sbr.rel (%p244) target = $region81
        $region80: #{tpu_custom_call.1} parent=76 // pred_region
          _
        $region81: #{tpu_custom_call.1} parent=76 // pred_fallthru
          _
        %s247 = sand.u32 %s27, 1
        %s248 = sand.u32 %s27, 1
        %s249 = smul.addr %s248, 8
        %s250 = scalar_lea.vmem [#allocation2], %s249
        %p251 = pneg %p40
        %p252 = pneg %p37
        %p253 = pneg %p61
        %p254 = pneg %p58
        %p255 = pneg %p82
        %p256 = pneg %p79
        %p257 = pneg %p103
        %p258 = pneg %p100
        %p259 = pneg %p124
        %p260 = pneg %p121
        %p261 = pneg %p150
        %p262 = pneg %p147
        %s263 = sand.u32 %s137, 1
        %s264 = scalar_lea.sflag [#allocation4], %s263
        %s265 = sand.u32 %s137, 1
        %s266 = smul.addr %s265, 8
        %s267 = scalar_lea.vmem [#allocation3], %s266
        %v269 = vld [vmem:[%s243] sm:$0xf]
        %v270 = vld [vmem:[%s243 + $0x4] sm:$0xf]
        %v271 = vld [vmem:[%s1] sm:$0xf]
        %v272 = vld [vmem:[%s1 + $0x4] sm:$0xf]
        %v273 = vld [vmem:[%s1 + $0x8] sm:$0xf]
        %v274 = vld [vmem:[%s1 + $0xc] sm:$0xf]
        %v275 = vld [vmem:[%s2] sm:$0xff]
        %v276 = vld [vmem:[%s2 + $0x8] sm:$0xff]
        %v277 = vld [vmem:[%s2 + $0x10] sm:$0xff]
        %v278 = vld [vmem:[%s2 + $0x18] sm:$0xff]
        %280 = vset.pattern.permute.xlu0 0
        %281 = vperm.xlu0 %280, %v275
        %v282 = vpop.permute.xlu0 %281
        %285 = vset.pattern.permute.xlu0 0
        %286 = vperm.xlu0 %285, %v276
        %v287 = vpop.permute.xlu0 %286
        %290 = vset.pattern.permute.xlu0 0
        %291 = vperm.xlu0 %290, %v277
        %v292 = vpop.permute.xlu0 %291
        %295 = vset.pattern.permute.xlu0 0
        %296 = vperm.xlu0 %295, %v278
        %v297 = vpop.permute.xlu0 %296
        %v303 = vunpack.c.l.b16 %v271
        %v304 = vunpack.c.l.b16 %v272
        %v305 = vunpack.c.l.b16 %v273
        %v306 = vunpack.c.l.b16 %v274
        %v307 = vpack.c.b16 %v304, %v303
        %v308 = vpack.c.b16 %v306, %v305
        %v311 = vunpack.c.l.b16 %v269
        %v312 = vunpack.c.l.b16 %v270
        %v313 = vpack.c.b16 %v312, %v311
        %vm315 = vcmask 130048
        %v317 = vsel %vm315, %v307, 0
        %v320 = vsel %vm315, %v308, 0
        %322 = vmatprep.subr.bf16.mxu0 0
        %323 = vmatpush1.bf16.msra.mxu0 %v313
        %324 = vmatprep.subr.bf16.mxu0 0
        %325 = vmatpush1.bf16.msra.mxu0 0
        %326 = vmatprep.subr.bf16.mxu0 0
        %327 = vmatpush1.bf16.msra.mxu0 0
        %328 = vmatprep.subr.bf16.mxu0 0
        %329 = vmatpush1.bf16.msra.mxu0 0
        %330 = vmatprep.subr.bf16.mxu0 0
        %331 = vmatpush1.bf16.msra.mxu0 0
        %332 = vmatprep.subr.bf16.mxu0 0
        %333 = vmatpush1.bf16.msra.mxu0 0
        %334 = vmatprep.subr.bf16.mxu0 0
        %335 = vmatpush1.bf16.msra.mxu0 0
        %336 = vmatprep.subr.bf16.mxu0 0
        %337 = vmatpush1.bf16.msra.mxu0 0
        %338 = vmatprep.subr.bf16.mxu0 0
        %339 = vmatpush1.bf16.msra.mxu0 0
        %340 = vmatprep.subr.bf16.mxu0 0
        %341 = vmatpush1.bf16.msra.mxu0 0
        %342 = vmatprep.subr.bf16.mxu0 0
        %343 = vmatpush1.bf16.msra.mxu0 0
        %344 = vmatprep.subr.bf16.mxu0 0
        %345 = vmatpush1.bf16.msra.mxu0 0
        %346 = vmatprep.subr.bf16.mxu0 0
        %347 = vmatpush1.bf16.msra.mxu0 0
        %348 = vmatprep.subr.bf16.mxu0 0
        %349 = vmatpush1.bf16.msra.mxu0 0
        %350 = vmatprep.subr.bf16.mxu0 0
        %351 = vmatpush1.bf16.msra.mxu0 0
        %352 = vmatprep.subr.bf16.mxu0 0
        %353 = vmatpush1.bf16.msra.mxu0 0
        %354 = vmatprep.mubr.bf16.mxu0 0
        %355 = vmatmul.mubr.bf16.gmra.mrb[0].mxu0 %v317
        %v356 = vpop.f32.mrb[0].mxu0
        %v357 = vadd.f32 %v282, %v356
        %v358 = vpop.f32.mrb[0].mxu0
        %v359 = vpop.f32.mrb[0].mxu0
        %v360 = vadd.f32 %v287, %v359
        %v361 = vpop.f32.mrb[0].mxu0
        %362 = vmatprep.mubr.bf16.mxu0 0
        %363 = vmatmul.mubr.bf16.gmra.mrb[0].mxu0 %v320
        %v364 = vpop.f32.mrb[0].mxu0
        %v365 = vadd.f32 %v292, %v364
        %v366 = vpop.f32.mrb[0].mxu0
        %v367 = vpop.f32.mrb[0].mxu0
        %v368 = vadd.f32 %v297, %v367
        %v369 = vpop.f32.mrb[0].mxu0
        %370 = vdwg.mxu0
        %v371 = vtanh.pop %v357
        %v372 = vtanh.pop %v360
        %v373 = vtanh.pop %v365
        %v374 = vtanh.pop %v368
        %v375 = vld [vmem:[%s3] sm:$0xf]
        %v376 = vld [vmem:[%s3 + $0x4] sm:$0xf]
        %v377 = vpack.c.bf16 %v372, %v371
        %v378 = vpack.c.bf16 %v374, %v373
        %v379 = vld [vmem:[%s4] sm:$0xff]
        %v380 = vld [vmem:[%s4 + $0x8] sm:$0xff]
        %382 = vset.pattern.permute.xlu0 0
        %383 = vperm.xlu0 %382, %v379
        %v384 = vpop.permute.xlu0 %383
        %387 = vset.pattern.permute.xlu0 0
        %388 = vperm.xlu0 %387, %v380
        %v389 = vpop.permute.xlu0 %388
        %v393 = vunpack.c.l.b16 %v375
        %v394 = vunpack.c.l.b16 %v376
        %v395 = vpack.c.b16 %v394, %v393
        %vm396 = vcmask 261120
        %v398 = vsel %vm396, %v395, 0
        %400 = vmatprep.subr.bf16.mxu0 0
        %401 = vmatpush1.bf16.msra.mxu0 %v377
        %402 = vmatprep.subr.bf16.mxu0 0
        %403 = vmatpush1.bf16.msra.mxu0 %v378
        %404 = vmatprep.subr.bf16.mxu0 0
        %405 = vmatpush1.bf16.msra.mxu0 0
        %406 = vmatprep.subr.bf16.mxu0 0
        %407 = vmatpush1.bf16.msra.mxu0 0
        %408 = vmatprep.subr.bf16.mxu0 0
        %409 = vmatpush1.bf16.msra.mxu0 0
        %410 = vmatprep.subr.bf16.mxu0 0
        %411 = vmatpush1.bf16.msra.mxu0 0
        %412 = vmatprep.subr.bf16.mxu0 0
        %413 = vmatpush1.bf16.msra.mxu0 0
        %414 = vmatprep.subr.bf16.mxu0 0
        %415 = vmatpush1.bf16.msra.mxu0 0
        %416 = vmatprep.subr.bf16.mxu0 0
        %417 = vmatpush1.bf16.msra.mxu0 0
        %418 = vmatprep.subr.bf16.mxu0 0
        %419 = vmatpush1.bf16.msra.mxu0 0
        %420 = vmatprep.subr.bf16.mxu0 0
        %421 = vmatpush1.bf16.msra.mxu0 0
        %422 = vmatprep.subr.bf16.mxu0 0
        %423 = vmatpush1.bf16.msra.mxu0 0
        %424 = vmatprep.subr.bf16.mxu0 0
        %425 = vmatpush1.bf16.msra.mxu0 0
        %426 = vmatprep.subr.bf16.mxu0 0
        %427 = vmatpush1.bf16.msra.mxu0 0
        %428 = vmatprep.subr.bf16.mxu0 0
        %429 = vmatpush1.bf16.msra.mxu0 0
        %430 = vmatprep.subr.bf16.mxu0 0
        %431 = vmatpush1.bf16.msra.mxu0 0
        %432 = vmatprep.mubr.bf16.mxu0 0
        %433 = vmatmul.mubr.bf16.gmra.mrb[0].mxu0 %v398
        %v434 = vpop.f32.mrb[0].mxu0
        %v435 = vadd.f32 %v384, %v434
        %v436 = vpop.f32.mrb[0].mxu0
        %v437 = vpop.f32.mrb[0].mxu0
        %v438 = vadd.f32 %v389, %v437
        %v439 = vpop.f32.mrb[0].mxu0
        %440 = vdwg.mxu0
        %v441 = vtanh.pop %v435
        %v442 = vtanh.pop %v438
        %v443 = vunpack.c.l.bf16 %v269
        %v444 = vunpack.c.l.bf16 %v270
        %v445 = vadd.f32 %v441, %v443
        %v446 = vadd.f32 %v442, %v444
        %v447 = vpack.c.bf16 %v446, %v445
        %v449 = vunpack.c.l.b16 %v447
        %v450 = vunpack.c.h.b16 %v447
        %v451 = vpack.c.b16 %v449, %v449
        %v452 = vpack.c.b16 %v450, %v450
        %455 = vst [vmem:[%s267] sm:$0xf] %v451
        %456 = vst [vmem:[%s267 + $0x4] sm:$0xf] %v452
        %s457 = sand.u32 %s137, 1
        %s458 = scalar_lea.sflag [#allocation4], %s457
        %s459 = sand.u32 %s137, 1
        %s460 = smul.addr %s459, 8
        %s461 = scalar_lea.vmem [#allocation3], %s460
        // Predicated region
        $region82: #{tpu_custom_call.1} parent=76 // pred_check
          %p462 = pneg %p147
        $region83: #{tpu_custom_call.1} parent=76 // pred_check_branch
          %464 = sbr.rel (%p462) target = $region85
        $region84: #{tpu_custom_call.1} parent=76 // pred_region
          %s466 = ssub.s32 128, 128
          %467 = vsyncadd %s458, %s466
          %s468 = smul.addr %s19, 64
          %s469 = scalar_lea.hbm %s5, %s468
          %s470 = sshll.u32 %s461, 4
          %s471 = int_to_ptr.vmem [resolvable:$true] %s470
          %476 = dma.vmem_to_hbm [thread:$0]  %s471, 128, %s469, %s458, 64, 192, 4
        $region85: #{tpu_custom_call.1} parent=76 // pred_fallthru
          _
      $region77: #{tpu_custom_call.1} parent=5 // pred_fallthru
        _
      %p477 = scmp.le.s32.totalorder 2, %s14
      // Predicated region
      $region86: #{tpu_custom_call.1} parent=5 // pred_check
        %p478 = pneg %p477
      $region87: #{tpu_custom_call.1} parent=5 // pred_check_branch
        %480 = sbr.rel (%p478) target = $region89
      $region88: #{tpu_custom_call.1} parent=5 // pred_region
        %s481 = ssub.s32 %s14, 2
        // Predicated region
        $region90: #{tpu_custom_call.1} parent=88 // pred_check
          %p482 = pneg %p153
        $region91: #{tpu_custom_call.1} parent=88 // pred_check_branch
          %484 = sbr.rel (%p482) target = $region93
        $region92: #{tpu_custom_call.1} parent=88 // pred_region
          %s485 = sand.u32 %s138, 1
          %s486 = scalar_lea.sflag [#allocation4], %s485
          %s487 = sand.u32 %s138, 1
          %s488 = smul.addr %s487, 8
          %s489 = scalar_lea.vmem [#allocation3], %s488
          %490 = dma.done %s486, 128
        $region93: #{tpu_custom_call.1} parent=88 // pred_fallthru
          _
      $region89: #{tpu_custom_call.1} parent=5 // pred_fallthru
        _
    $region6: #{tpu_custom_call.1} parent=1 // loop_footer
      %s18 = sadd.s32 1, %s14
    $region7: #{tpu_custom_call.1} parent=1 // loop_footer_branch
      %13 = sbr.rel target = $region3
    $region8: #{tpu_custom_call.1} parent=1 // loop_exit
      _
    %491 = vsyncpa [#allocation4], 1
    %s492 = scalar_lea.sflag [#allocation4], 1
    %493 = vsyncpa %s492, 1

</llo_original>
